<compile_context>
chip_gen: v5e
topology: v5e:2x2
jax: 0.10.0
libtpu: 0.0.40
codegen_flags: <defaults>
</compile_context>

<pallas_src>
import functools

import jax
import jax.numpy as jnp
from jax.experimental import pallas as pl
from jax.experimental.pallas import tpu as pltpu

EPS = 1e-5
_LANE = 128
_RESIDENT_SLAB_F32_LIMIT = 4 * 1024 * 1024   # per-channel-tile slab, f32 bytes
_STREAM_BLOCK_F32_LIMIT = 2 * 1024 * 1024    # per-grid-step x block, f32 bytes
_VMEM_LIMIT_BYTES = 48 * 1024 * 1024         # < 64 MiB physical on v7x


# --------------------------------------------------------------------------
# Tile selection helpers
# --------------------------------------------------------------------------
def _sublane_granule(dtype):
    itemsize = jnp.dtype(dtype).itemsize
    return {4: 8, 2: 16, 1: 32}.get(itemsize, 8)


def _channel_tile_candidates(C, dtype):
    g = _sublane_granule(dtype)
    cands = [t for t in range(g, C + 1, g) if C % t == 0]
    if not cands:
        cands = [C]               # full-dim block is always a legal block shape
    return sorted(cands, reverse=True)


def _pick_resident_tc(N, C, HWp, dtype):
    """Largest channel tile whose (N, tC, HWp) f32 slab fits the budget.

    Prefers >= 2 channel tiles so the single 'parallel' grid axis can be split
    across v7x's two TensorCores."""
    feasible = [t for t in _channel_tile_candidates(C, dtype)
                if N * t * HWp * 4 <= _RESIDENT_SLAB_F32_LIMIT]
    if not feasible:
        return None
    multi = [t for t in feasible if C // t >= 2]
    return max(multi) if multi else max(feasible)


def _pick_stream_tiles(N, C, HWp, dtype, cap_bytes):
    cands = _channel_tile_candidates(C, dtype)
    small = [t for t in cands if t <= 256] or [min(cands)]
    multi = [t for t in small if C // t >= 2]
    tC = max(multi) if multi else max(small)

    # Lane tile: largest multiple-of-128 divisor of HWp under the cap
    # (and <= 4096 so the lane-fold loop stays short).
    q = HWp // _LANE
    tq = 1
    for d in range(q, 0, -1):
        if q % d == 0 and d * _LANE <= 4096 and tC * d * _LANE * 4 <= cap_bytes:
            tq = d
            break
    tHW = tq * _LANE

    # Batch tile: largest divisor of N keeping the block under the cap.
    nB = 1
    for d in range(N, 0, -1):
        if N % d == 0 and d * tC * tHW * 4 <= cap_bytes:
            nB = d
            break
    return tC, nB, tHW


# --------------------------------------------------------------------------
# Resident (single-pass) kernel: whole (N, tC, HWp) slab in VMEM.
# --------------------------------------------------------------------------
def _bn_relu_resident_kernel(x_ref, g_ref, b_ref, o_ref, *, inv_count,
                             pad_total):
    tc = g_ref.shape[0]
    x = x_ref[...].astype(jnp.float32)                       # (N, tC, HWp)

    # mean: lane reduce then fold the batch slabs (zero pads add nothing).
    s = jnp.sum(jnp.sum(x, axis=2, keepdims=True), axis=0, keepdims=True)
    mean = s * inv_count                                      # (1, tC, 1)

    # Exact two-pass variance from the resident copy; remove the pad columns'
    # (0 - mean)^2 contribution analytically.
    d = x - mean
    s2 = jnp.sum(jnp.sum(d * d, axis=2, keepdims=True), axis=0, keepdims=True)
    var = jnp.maximum((s2 - pad_total * (mean * mean)) * inv_count, 0.0)

    scale = g_ref[...].reshape(1, tc, 1) * jax.lax.rsqrt(var + EPS)
    bias = b_ref[...].reshape(1, tc, 1) - mean * scale
    o_ref[...] = jnp.maximum(x * scale + bias, 0.0).astype(o_ref.dtype)


def _resident_call(x, g, b, tC, inv_count, pad_total):
    N, C, HWp = x.shape
    kernel = functools.partial(_bn_relu_resident_kernel, inv_count=inv_count,
                               pad_total=pad_total)
    return pl.pallas_call(
        kernel,
        out_shape=jax.ShapeDtypeStruct((N, C, HWp), x.dtype),
        grid_spec=pltpu.PrefetchScalarGridSpec(
            num_scalar_prefetch=0,
            grid=(C // tC,),
            in_specs=[
                pl.BlockSpec((N, tC, HWp), lambda c: (0, c, 0)),
                pl.BlockSpec((tC, 1), lambda c: (c, 0)),
                pl.BlockSpec((tC, 1), lambda c: (c, 0)),
            ],
            out_specs=pl.BlockSpec((N, tC, HWp), lambda c: (0, c, 0)),
        ),
        compiler_params=pltpu.CompilerParams(
            dimension_semantics=("parallel",),
            vmem_limit_bytes=_VMEM_LIMIT_BYTES),
    )(x, g, b)


# --------------------------------------------------------------------------
# Streaming fallback: stats pass (reduction) + fully-parallel apply pass.
# --------------------------------------------------------------------------
def _bn_stats_kernel(x_ref, g_ref, b_ref, scale_ref, bias_ref,
                     sum_ref, ssq_ref, pivot_ref, *, inv_count, pad_total):
    n = pl.program_id(1)
    hw = pl.program_id(2)
    first = jnp.logical_and(n == 0, hw == 0)
    last = jnp.logical_and(n == pl.num_programs(1) - 1,
                           hw == pl.num_programs(2) - 1)

    x = x_ref[...].astype(jnp.float32)                        # (nB, tC, tHW)
    tc = pivot_ref.shape[0]
    thw = x.shape[2]

    @pl.when(first)
    def _init():
        sum_ref[...] = jnp.zeros_like(sum_ref)
        ssq_ref[...] = jnp.zeros_like(ssq_ref)
        # Per-channel pivot from the first tile: shifted sums avoid the
        # catastrophic cancellation of E[x^2] - mean^2.
        pivot_ref[...] = jnp.mean(jnp.mean(x, axis=2, keepdims=True), axis=0)

    pivot = pivot_ref[...].reshape(1, tc, 1)
    d = x - pivot
    s_tile = jnp.sum(d, axis=0)                               # (tC, tHW)
    q_tile = jnp.sum(d * d, axis=0)                           # (tC, tHW)

    # Fold 128-lane groups into the lane-wide accumulators with plain VPU
    # adds (static, lane-aligned slices); single cross-lane reduce at the end.
    s_acc = sum_ref[...]
    q_acc = ssq_ref[...]
    for k in range(thw // _LANE):
        lo, hi = k * _LANE, (k + 1) * _LANE
        s_acc = s_acc + s_tile[:, lo:hi]
        q_acc = q_acc + q_tile[:, lo:hi]
    sum_ref[...] = s_acc
    ssq_ref[...] = q_acc

    @pl.when(last)
    def _finalize():
        pv = pivot_ref[...]                                   # (tC, 1)
        s1 = jnp.sum(sum_ref[...], axis=1, keepdims=True)     # one XLU reduce
        s2 = jnp.sum(ssq_ref[...], axis=1, keepdims=True)
        # Zero-padded columns contributed d = -pivot each; remove them exactly.
        s1 = s1 + pad_total * pv
        s2 = s2 - pad_total * pv * pv
        mu = s1 * inv_count
        var = jnp.maximum(s2 * inv_count - mu * mu, 0.0)
        scale = g_ref[...] * jax.lax.rsqrt(var + EPS)
        scale_ref[...] = scale
        bias_ref[...] = b_ref[...] - (pv + mu) * scale


def _bn_apply_kernel(x_ref, scale_ref, bias_ref, o_ref):
    tc = scale_ref.shape[0]
    x = x_ref[...].astype(jnp.float32)                        # (nB, tC, tHW)
    scale = scale_ref[...].reshape(1, tc, 1)
    bias = bias_ref[...].reshape(1, tc, 1)
    o_ref[...] = jnp.maximum(x * scale + bias, 0.0).astype(o_ref.dtype)


def _stream_call(x, g, b, inv_count, pad_total, cap_bytes):
    N, C, HWp = x.shape
    tC, nB, tHW = _pick_stream_tiles(N, C, HWp, x.dtype, cap_bytes)
    c_tiles, n_tiles, hw_tiles = C // tC, N // nB, HWp // tHW

    stats_kernel = functools.partial(_bn_stats_kernel, inv_count=inv_count,
                                     pad_total=pad_total)
    scale, bias = pl.pallas_call(
        stats_kernel,
        out_shape=(jax.ShapeDtypeStruct((C, 1), jnp.float32),
                   jax.ShapeDtypeStruct((C, 1), jnp.float32)),
        grid_spec=pltpu.PrefetchScalarGridSpec(
            num_scalar_prefetch=0,
            grid=(c_tiles, n_tiles, hw_tiles),
            in_specs=[
                pl.BlockSpec((nB, tC, tHW), lambda c, n, hw: (n, c, hw)),
                pl.BlockSpec((tC, 1), lambda c, n, hw: (c, 0)),
                pl.BlockSpec((tC, 1), lambda c, n, hw: (c, 0)),
            ],
            out_specs=[pl.BlockSpec((tC, 1), lambda c, n, hw: (c, 0)),
                       pl.BlockSpec((tC, 1), lambda c, n, hw: (c, 0))],
            scratch_shapes=[
                pltpu.VMEM((tC, _LANE), jnp.float32),   # lane-wide running sum
                pltpu.VMEM((tC, _LANE), jnp.float32),   # lane-wide running ssq
                pltpu.VMEM((tC, 1), jnp.float32),       # per-channel pivot
            ],
        ),
        compiler_params=pltpu.CompilerParams(
            dimension_semantics=("parallel", "arbitrary", "arbitrary"),
            vmem_limit_bytes=_VMEM_LIMIT_BYTES),
    )(x, g, b)

    # Apply pass: no reduction -> every grid axis is parallel (v7x megacore).
    out = pl.pallas_call(
        _bn_apply_kernel,
        out_shape=jax.ShapeDtypeStruct((N, C, HWp), x.dtype),
        grid_spec=pltpu.PrefetchScalarGridSpec(
            num_scalar_prefetch=0,
            grid=(c_tiles, n_tiles, hw_tiles),
            in_specs=[
                pl.BlockSpec((nB, tC, tHW), lambda c, n, hw: (n, c, hw)),
                pl.BlockSpec((tC, 1), lambda c, n, hw: (c, 0)),
                pl.BlockSpec((tC, 1), lambda c, n, hw: (c, 0)),
            ],
            out_specs=pl.BlockSpec((nB, tC, tHW), lambda c, n, hw: (n, c, hw)),
        ),
        compiler_params=pltpu.CompilerParams(
            dimension_semantics=("parallel", "parallel", "parallel"),
            vmem_limit_bytes=_VMEM_LIMIT_BYTES),
    )(x, scale, bias)
    return out


# --------------------------------------------------------------------------
# Public wrapper
# --------------------------------------------------------------------------
def batchnorm_relu(x_nchw, gamma, beta, *, force_stream=False,
                   stream_block_cap_bytes=_STREAM_BLOCK_F32_LIMIT):
    """Training-mode BatchNorm2d + ReLU. x_nchw: (N,C,H,W); gamma,beta: (C,)."""
    N, C, H, W = x_nchw.shape
    HW = H * W
    HWp = ((HW + _LANE - 1) // _LANE) * _LANE

    x = x_nchw.reshape(N, C, HW)                 # free reshape
    if HWp != HW:
        # Zero-pad to a lane-dense width; pad contribution is removed
        # analytically in the kernels and the columns sliced off below.
        x = jnp.pad(x, ((0, 0), (0, 0), (0, HWp - HW)))
    g = gamma.reshape(C, 1).astype(jnp.float32)
    b = beta.reshape(C, 1).astype(jnp.float32)

    inv_count = 1.0 / float(N * HW)
    pad_total = float(N * (HWp - HW))

    tc_res = None if force_stream else _pick_resident_tc(N, C, HWp, x.dtype)
    if tc_res is not None:
        out = _resident_call(x, g, b, tc_res, inv_count, pad_total)
    else:
        out = _stream_call(x, g, b, inv_count, pad_total, stream_block_cap_bytes)

    if HWp != HW:
        out = out[:, :, :HW]
    return out.reshape(N, C, H, W)


def _reference(x_nchw, gamma, beta):
    x = x_nchw.astype(jnp.float32)
    mean = jnp.mean(x, axis=(0, 2, 3), keepdims=True)
    var = jnp.mean(jnp.square(x - mean), axis=(0, 2, 3), keepdims=True)
    y = (x - mean) / jnp.sqrt(var + EPS)
    y = y * gamma.reshape(1, -1, 1, 1) + beta.reshape(1, -1, 1, 1)
    return jnp.maximum(y, 0.0).astype(x_nchw.dtype)


if __name__ == "__main__":
    key = jax.random.PRNGKey(0)
    kx, kg, kb = jax.random.split(key, 3)

    # 1) Primary small shape implied by the module (batch=2, channels=4, 16x16)
    #    -> resident single-pass path.
    N, C, H, W = 2, 4, 16, 16
    x = jax.random.normal(kx, (N, C, H, W), dtype=jnp.float32)
    gamma = 1.0 + 0.1 * jax.random.normal(kg, (C,), dtype=jnp.float32)
    beta = 0.1 * jax.random.normal(kb, (C,), dtype=jnp.float32)
    out = jax.block_until_ready(batchnorm_relu(x, gamma, beta))
    ref = _reference(x, gamma, beta)
    assert out.shape == (N, C, H, W)
    assert jnp.allclose(out, ref, atol=1e-4, rtol=1e-4)

    # 2) Resident path with >= 2 channel tiles (C=16 -> tC=8).
    k2x, k2g, k2b = jax.random.split(jax.random.PRNGKey(0), 3)
    x2 = jax.random.normal(k2x, (2, 16, 64, 64), dtype=jnp.float32)
    g2 = 1.0 + 0.1 * jax.random.normal(k2g, (16,), dtype=jnp.float32)
    b2 = 0.1 * jax.random.normal(k2b, (16,), dtype=jnp.float32)
    out2 = jax.block_until_ready(batchnorm_relu(x2, g2, b2))
    assert jnp.allclose(out2, _reference(x2, g2, b2), atol=1e-4, rtol=1e-4)

    # 3) Resident path with HW padding (9x9=81 -> padded to 128).
    k3x, k3g, k3b = jax.random.split(jax.random.PRNGKey(0), 3)
    x3 = jax.random.normal(k3x, (2, 4, 9, 9), dtype=jnp.float32)
    g3 = 1.0 + 0.1 * jax.random.normal(k3g, (4,), dtype=jnp.float32)
    b3 = 0.1 * jax.random.normal(k3b, (4,), dtype=jnp.float32)
    out3 = jax.block_until_ready(batchnorm_relu(x3, g3, b3))
    assert jnp.allclose(out3, _reference(x3, g3, b3), atol=1e-4, rtol=1e-4)

    # 4) Forced streaming fallback with padding, multi-step reduction and a
    #    nonzero mean offset (exercises the shifted-sum / pad-correction path).
    k4x, k4g, k4b = jax.random.split(jax.random.PRNGKey(0), 3)
    x4 = 5.0 + jax.random.normal(k4x, (2, 16, 14, 14), dtype=jnp.float32)
    g4 = 1.0 + 0.1 * jax.random.normal(k4g, (16,), dtype=jnp.float32)
    b4 = 0.1 * jax.random.normal(k4b, (16,), dtype=jnp.float32)
    out4 = jax.block_until_ready(
        batchnorm_relu(x4, g4, b4, force_stream=True,
                       stream_block_cap_bytes=4096))
    assert jnp.allclose(out4, _reference(x4, g4, b4), atol=1e-4, rtol=1e-4)

    print("KERNEL_OK")
</pallas_src>

<mosaic_0001>
module attributes {stable_mosaic.version = 11 : i64} {
  func.func @_bn_relu_resident_kernel(%arg0: i32, %arg1: memref<2x4x256xf32, #tpu.memory_space<vmem>>, %arg2: memref<4x1xf32, #tpu.memory_space<vmem>>, %arg3: memref<4x1xf32, #tpu.memory_space<vmem>>, %arg4: memref<2x4x256xf32, #tpu.memory_space<vmem>>) attributes {dimension_semantics = [#tpu.dimension_semantics<parallel>], iteration_bounds = array<i64: 1>, scalar_prefetch = 0 : i64, scratch_operands = 0 : i64, tpu.core_type = #tpu.core_type<tc>, window_params = [{transform_indices = @transform_0, window_bounds = array<i64: 2, 4, 256>}, {transform_indices = @transform_1, window_bounds = array<i64: 4, 1>}, {transform_indices = @transform_2, window_bounds = array<i64: 4, 1>}, {transform_indices = @transform_3, window_bounds = array<i64: 2, 4, 256>}]} {
    %c0 = arith.constant 0 : index
    %c0_0 = arith.constant 0 : index
    %c0_1 = arith.constant 0 : index
    %0 = vector.load %arg1[%c0, %c0_0, %c0_1] : memref<2x4x256xf32, #tpu.memory_space<vmem>>, vector<2x4x256xf32>
    %cst = arith.constant dense<0.000000e+00> : vector<2x4xf32>
    %1 = vector.multi_reduction <add>, %0, %cst [2] : vector<2x4x256xf32> to vector<2x4xf32>
    %2 = vector.shape_cast %1 : vector<2x4xf32> to vector<2x4x1xf32>
    %cst_2 = arith.constant dense<0.000000e+00> : vector<4x1xf32>
    %3 = vector.multi_reduction <add>, %2, %cst_2 [0] : vector<2x4x1xf32> to vector<4x1xf32>
    %4 = vector.shape_cast %3 : vector<4x1xf32> to vector<1x4x1xf32>
    %cst_3 = arith.constant 0.001953125 : f32
    %5 = vector.broadcast %cst_3 : f32 to vector<1x4x1xf32>
    %6 = arith.mulf %4, %5 : vector<1x4x1xf32>
    %7 = vector.broadcast %6 : vector<1x4x1xf32> to vector<2x4x256xf32>
    %8 = arith.subf %0, %7 : vector<2x4x256xf32>
    %9 = arith.mulf %8, %8 : vector<2x4x256xf32>
    %cst_4 = arith.constant dense<0.000000e+00> : vector<2x4xf32>
    %10 = vector.multi_reduction <add>, %9, %cst_4 [2] : vector<2x4x256xf32> to vector<2x4xf32>
    %11 = vector.shape_cast %10 : vector<2x4xf32> to vector<2x4x1xf32>
    %cst_5 = arith.constant dense<0.000000e+00> : vector<4x1xf32>
    %12 = vector.multi_reduction <add>, %11, %cst_5 [0] : vector<2x4x1xf32> to vector<4x1xf32>
    %13 = vector.shape_cast %12 : vector<4x1xf32> to vector<1x4x1xf32>
    %14 = arith.mulf %6, %6 : vector<1x4x1xf32>
    %cst_6 = arith.constant 0.000000e+00 : f32
    %15 = vector.broadcast %cst_6 : f32 to vector<1x4x1xf32>
    %16 = arith.mulf %15, %14 : vector<1x4x1xf32>
    %17 = arith.subf %13, %16 : vector<1x4x1xf32>
    %cst_7 = arith.constant 0.001953125 : f32
    %18 = vector.broadcast %cst_7 : f32 to vector<1x4x1xf32>
    %19 = arith.mulf %17, %18 : vector<1x4x1xf32>
    %cst_8 = arith.constant 0.000000e+00 : f32
    %20 = vector.broadcast %cst_8 : f32 to vector<1x4x1xf32>
    %21 = arith.maximumf %19, %20 : vector<1x4x1xf32>
    %c0_9 = arith.constant 0 : index
    %c0_10 = arith.constant 0 : index
    %22 = vector.load %arg2[%c0_9, %c0_10] : memref<4x1xf32, #tpu.memory_space<vmem>>, vector<4x1xf32>
    %23 = vector.shape_cast %22 : vector<4x1xf32> to vector<1x4x1xf32>
    %cst_11 = arith.constant 9.99999974E-6 : f32
    %24 = vector.broadcast %cst_11 : f32 to vector<1x4x1xf32>
    %25 = arith.addf %21, %24 : vector<1x4x1xf32>
    %26 = math.rsqrt %25 : vector<1x4x1xf32>
    %27 = arith.mulf %23, %26 : vector<1x4x1xf32>
    %c0_12 = arith.constant 0 : index
    %c0_13 = arith.constant 0 : index
    %28 = vector.load %arg3[%c0_12, %c0_13] : memref<4x1xf32, #tpu.memory_space<vmem>>, vector<4x1xf32>
    %29 = vector.shape_cast %28 : vector<4x1xf32> to vector<1x4x1xf32>
    %30 = arith.mulf %6, %27 : vector<1x4x1xf32>
    %31 = arith.subf %29, %30 : vector<1x4x1xf32>
    %32 = vector.broadcast %27 : vector<1x4x1xf32> to vector<2x4x256xf32>
    %33 = arith.mulf %0, %32 : vector<2x4x256xf32>
    %34 = vector.broadcast %31 : vector<1x4x1xf32> to vector<2x4x256xf32>
    %35 = arith.addf %33, %34 : vector<2x4x256xf32>
    %cst_14 = arith.constant 0.000000e+00 : f32
    %36 = vector.broadcast %cst_14 : f32 to vector<2x4x256xf32>
    %37 = arith.maximumf %35, %36 : vector<2x4x256xf32>
    %c0_15 = arith.constant 0 : index
    %c0_16 = arith.constant 0 : index
    %c0_17 = arith.constant 0 : index
    %38 = vector.load %arg4[%c0_15, %c0_16, %c0_17] : memref<2x4x256xf32, #tpu.memory_space<vmem>>, vector<2x4x256xf32>
    tpu.vector_store %arg4[%c0_15, %c0_16, %c0_17], %37 {strides = array<i32>} : memref<2x4x256xf32, #tpu.memory_space<vmem>>, vector<2x4x256xf32>,
    return
  }
  func.func @transform_0(%arg0: i32) -> (i32, i32, i32) {
    %c0_i32 = arith.constant 0 : i32
    %c0_i32_0 = arith.constant 0 : i32
    %c0_i32_1 = arith.constant 0 : i32
    return %c0_i32, %arg0, %c0_i32_0 : i32, i32, i32
  }
  func.func @transform_1(%arg0: i32) -> (i32, i32) {
    %c0_i32 = arith.constant 0 : i32
    %c0_i32_0 = arith.constant 0 : i32
    return %arg0, %c0_i32 : i32, i32
  }
  func.func @transform_2(%arg0: i32) -> (i32, i32) {
    %c0_i32 = arith.constant 0 : i32
    %c0_i32_0 = arith.constant 0 : i32
    return %arg0, %c0_i32 : i32, i32
  }
  func.func @transform_3(%arg0: i32) -> (i32, i32, i32) {
    %c0_i32 = arith.constant 0 : i32
    %c0_i32_0 = arith.constant 0 : i32
    %c0_i32_1 = arith.constant 0 : i32
    return %c0_i32, %arg0, %c0_i32_0 : i32, i32, i32
  }
}

</mosaic_0001>

<llo_original>
// kernel: tpu_custom_call.1
$region0: #{tpu_custom_call.1}
  #allocation0 [shape = 'u32[]', space=smem, size = 0x4, offset = 0x4, fixed_abs, tag = 'smem constant byte address 0x4 - core index']
  #allocation1 [shape = 'u32[72,128]{1,0:T(1,128)}', space=vmem, size = 0x9000, scoped, tag = 'internal scratch']
  %s0 = inlined_call_operand.hbm [shape: f32[2,4,256], index: 0, kind: input, shape index: {}]
  %s1 = inlined_call_operand.vmem [shape: f32[4,1], index: 1, kind: input, shape index: {}]
  %s2 = inlined_call_operand.vmem [shape: f32[4,1], index: 2, kind: input, shape index: {}]
  %s3 = inlined_call_operand.hbm [shape: f32[2,4,256], index: 3, kind: output, shape index: {}]
  %s4 = sld [smem:[#allocation0]]
  $region26: #{tpu_custom_call.1} parent=0
    _
  %s6 = ssub.s32 1, %s4
  %s7 = scalar_select 0, %s6, %s4
  $region1: #{tpu_custom_call.1} parent=0
    #allocation2 [shape = 'u8[8192]{0}', space=vmem, size = 0x2000, scoped, tag = 'input window, operand 0, single buffered']
    #allocation3 [shape = 's32[1]{0}', space=sflag, size = 0x4, scoped, tag = 'scoped memory for tpu_custom_call.1']
    #allocation4 [shape = 's32[1]{0}', space=sflag, size = 0x4, scoped, tag = 'scoped memory for tpu_custom_call.1']
    #allocation5 [shape = 'u8[8192]{0}', space=vmem, size = 0x2000, scoped, tag = 'output window, operand 0, single buffered']
    %8 = vsyncpa [#allocation3], 0
    %9 = vsyncpa [#allocation4], 0
    // Predicated region
    $region2: #{tpu_custom_call.1} parent=1 // pred_check
      _
    $region3: #{tpu_custom_call.1} parent=1 // pred_check_branch
      %11 = sbr.rel (0) target = $region5
    $region4: #{tpu_custom_call.1} parent=1 // pred_region
      %13 = vsyncadd [#allocation3], 0
      %s14 = sshll.u32 %s0, 4
      %s15 = int_to_ptr.hbm [resolvable:$true] %s14
      %s16 = sshll.u32 [#allocation2], 4
      %s17 = int_to_ptr.vmem [resolvable:$true] %s16
      %22 = dma.hbm_to_vmem [thread:$0]  %s15, 256, %s17, [#allocation3], 128, 128, 8
    $region5: #{tpu_custom_call.1} parent=1 // pred_fallthru
      _
    // Predicated region
    $region6: #{tpu_custom_call.1} parent=1 // pred_check
      _
    $region7: #{tpu_custom_call.1} parent=1 // pred_check_branch
      %24 = sbr.rel (0) target = $region9
    $region8: #{tpu_custom_call.1} parent=1 // pred_region
      _
    $region9: #{tpu_custom_call.1} parent=1 // pred_fallthru
      _
    // Predicated region
    $region10: #{tpu_custom_call.1} parent=1 // pred_check
      _
    $region11: #{tpu_custom_call.1} parent=1 // pred_check_branch
      %26 = sbr.rel (0) target = $region13
    $region12: #{tpu_custom_call.1} parent=1 // pred_region
      _
    $region13: #{tpu_custom_call.1} parent=1 // pred_fallthru
      _
    // Predicated region
    $region14: #{tpu_custom_call.1} parent=1 // pred_check
      _
    $region15: #{tpu_custom_call.1} parent=1 // pred_check_branch
      %28 = sbr.rel (0) target = $region17
    $region16: #{tpu_custom_call.1} parent=1 // pred_region
      %30 = dma.done [#allocation3], 256
    $region17: #{tpu_custom_call.1} parent=1 // pred_fallthru
      _
    %v31 = vld [vmem:[#allocation2] sm:$0xff]
    %v32 = vld [vmem:[#allocation2 + $0x8] sm:$0xff]
    %35 = vst [vmem:[#allocation1] ss:$2 sm:$0xff] %v31
    %v36 = vld.sshfl [vmem:[#allocation1] sm:$0xff pattern:$0x75316420]
    %v37 = vld.sshfl [vmem:[#allocation1 + $0x8] sm:$0xff pattern:$0x75316420]
    %s38 = scalar_lea.vmem [#allocation1], 16
    %39 = vst [vmem:[%s38] ss:$2 sm:$0xff] %v32
    %v40 = vld.sshfl [vmem:[#allocation1 + $0x10] sm:$0xff pattern:$0x75316420]
    %v41 = vld.sshfl [vmem:[#allocation1 + $0x18] sm:$0xff pattern:$0x75316420]
    %vm46 = vcmask 1043456
    %v47 = vsel %vm46, %v36, 0.0
    %v48 = vsel %vm46, %v37, 0.0
    %v49 = vadd.f32 %v47, %v48
    %50 = vadd.xlane.f32.xlu0 %v49
    %v51 = vpop.xlane.xlu0 %50
    %v52 = vsel %vm46, %v40, 0.0
    %v53 = vsel %vm46, %v41, 0.0
    %v54 = vadd.f32 %v52, %v53
    %55 = vadd.xlane.f32.xlu0 %v54
    %v56 = vpop.xlane.xlu0 %55
    %v57 = vsel %vm46, %v51, 0.0
    %v58 = vsel %vm46, %v56, 0.0
    %v59 = vadd.f32 %v57, %v58
    %v60 = vmul.f32 %v59, 0.001953125
    %v63 = vunpack.c.l.s4 839922192
    %v64 = vunpack.c.0.s8 %v63
    %v65 = vperm.slane %v60, %v64
    %v67 = vsub.f32 %v31, %v65
    %v68 = vsub.f32 %v32, %v65
    %v69 = vmul.f32 %v67, %v67
    %v70 = vmul.f32 %v68, %v68
    %73 = vst [vmem:[#allocation1] ss:$2 sm:$0xff] %v69
    %v74 = vld.sshfl [vmem:[#allocation1] sm:$0xff pattern:$0x75316420]
    %v75 = vld.sshfl [vmem:[#allocation1 + $0x8] sm:$0xff pattern:$0x75316420]
    %s76 = scalar_lea.vmem [#allocation1], 16
    %77 = vst [vmem:[%s76] ss:$2 sm:$0xff] %v70
    %v78 = vld.sshfl [vmem:[#allocation1 + $0x10] sm:$0xff pattern:$0x75316420]
    %v79 = vld.sshfl [vmem:[#allocation1 + $0x18] sm:$0xff pattern:$0x75316420]
    %v84 = vsel %vm46, %v74, 0.0
    %v85 = vsel %vm46, %v75, 0.0
    %v86 = vadd.f32 %v84, %v85
    %87 = vadd.xlane.f32.xlu0 %v86
    %v88 = vpop.xlane.xlu0 %87
    %v89 = vsel %vm46, %v78, 0.0
    %v90 = vsel %vm46, %v79, 0.0
    %v91 = vadd.f32 %v89, %v90
    %92 = vadd.xlane.f32.xlu0 %v91
    %v93 = vpop.xlane.xlu0 %92
    %v94 = vsel %vm46, %v88, 0.0
    %v95 = vsel %vm46, %v93, 0.0
    %v96 = vadd.f32 %v94, %v95
    %v97 = vmul.f32 %v60, %v60
    %v98 = vmul.f32 %v97, 0.0
    %v99 = vsub.f32 %v96, %v98
    %v100 = vmul.f32 %v99, 0.001953125
    %v101 = vmax.f32 %v100, 0.0
    %v102 = vld [vmem:[%s1] sm:$0xf]
    %v103 = vadd.f32 %v101, 1e-05
    %v104 = vrsqrt.pop %v103
    %v105 = vmul.f32 %v104, %v103
    %v106 = vmul.f32 %v105, %v104
    %v107 = vmul.f32 0.5, %v106
    %v108 = vsub.f32 1.5, %v107
    %v109 = vmul.f32 %v104, %v108
    %vm110 = vweird.f32 %v103
    %vm111 = vweird.f32 %v104
    %vm112 = vmor %vm110, %vm111
    %v113 = vsel %vm112, %v104, %v109
    %v114 = vmul.f32 %v102, %v113
    %v115 = vld [vmem:[%s2] sm:$0xf]
    %v116 = vmul.f32 %v60, %v114
    %v117 = vsub.f32 %v115, %v116
    %119 = vset.pattern.permute.xlu0 0
    %120 = vperm.xlu0 %119, %v114
    %v121 = vpop.permute.xlu0 %120
    %v123 = vunpack.c.l.s4 839922192
    %v124 = vunpack.c.0.s8 %v123
    %v125 = vperm.slane %v121, %v124
    %v127 = vmul.f32 %v31, %v125
    %v128 = vmul.f32 %v32, %v125
    %130 = vset.pattern.permute.xlu0 0
    %131 = vperm.xlu0 %130, %v117
    %v132 = vpop.permute.xlu0 %131
    %v134 = vunpack.c.l.s4 839922192
    %v135 = vunpack.c.0.s8 %v134
    %v136 = vperm.slane %v132, %v135
    %v138 = vadd.f32 %v127, %v136
    %v139 = vadd.f32 %v128, %v136
    %v140 = vmax.f32 %v138, 0.0
    %v141 = vmax.f32 %v139, 0.0
    %142 = vst [vmem:[#allocation5] sm:$0xff] %v140
    %143 = vst [vmem:[#allocation5 + $0x8] sm:$0xff] %v141
    // Predicated region
    $region18: #{tpu_custom_call.1} parent=1 // pred_check
      _
    $region19: #{tpu_custom_call.1} parent=1 // pred_check_branch
      %145 = sbr.rel (0) target = $region21
    $region20: #{tpu_custom_call.1} parent=1 // pred_region
      %147 = vsyncadd [#allocation4], 0
      %s148 = sshll.u32 [#allocation5], 4
      %s149 = int_to_ptr.vmem [resolvable:$true] %s148
      %s150 = sshll.u32 %s3, 4
      %s151 = int_to_ptr.hbm [resolvable:$true] %s150
      %156 = dma.vmem_to_hbm [thread:$0]  %s149, 256, %s151, [#allocation4], 128, 128, 8
    $region21: #{tpu_custom_call.1} parent=1 // pred_fallthru
      _
    // Predicated region
    $region22: #{tpu_custom_call.1} parent=1 // pred_check
      _
    $region23: #{tpu_custom_call.1} parent=1 // pred_check_branch
      %158 = sbr.rel (0) target = $region25
    $region24: #{tpu_custom_call.1} parent=1 // pred_region
      %160 = dma.done [#allocation4], 256
    $region25: #{tpu_custom_call.1} parent=1 // pred_fallthru
      _
    %161 = vsyncpa [#allocation3], 1
    %162 = vsyncpa [#allocation4], 1

</llo_original>
